<compile_context>
chip_gen: v7x
topology: tpu7x:2x2x1
jax: 0.10.0
libtpu: 0.0.40
codegen_flags: <defaults>
</compile_context>

<pallas_src>
import functools

import jax
import jax.numpy as jnp
from jax.experimental import pallas as pl
from jax.experimental.pallas import tpu as pltpu


def _round_up(x, m):
    return ((x + m - 1) // m) * m


def _vmem_budget_bytes():
    """Usable VMEM budget for this chip generation (physical minus headroom)."""
    try:
        cap = pltpu.get_tpu_info().vmem_capacity_bytes
    except Exception:
        cap = 64 * 1024 * 1024            # assume the smallest (v7x) if query fails
    headroom = max(8 * 1024 * 1024, cap // 6)   # v7x: ~53 MiB usable, v5e/v6e: ~107 MiB
    return int(cap - headroom)


def _pick_col_tile(fo_p, cap=512):
    """Largest multiple of 128 that divides fo_p and is <= cap."""
    for t in (512, 384, 256, 128):
        if t <= cap and fo_p % t == 0:
            return t
    return 128


def _pick_batch_tile(B, per_row_bytes, avail_bytes, target=512):
    """Batch tile: 16-aligned (bf16 sublanes), prefer 256-aligned, fit the VMEM
    budget left after resident weights, and balance against B so the last tile
    is not nearly empty."""
    cap = max(16, (avail_bytes // max(per_row_bytes, 1)) // 16 * 16)
    tgt = max(16, min(target, cap))
    if tgt >= 256:
        tgt = (tgt // 256) * 256
    n_tiles = max(1, -(-B // tgt))
    tb = _round_up(-(-B // n_tiles), 16)
    return min(tb, cap)


# ---------------------------------------------------------------------------
# Kernels
# ---------------------------------------------------------------------------
def _fused_kernel(x_ref, wx_ref, shx_ref, w2_ref, sh2_ref, o_ref, *, fo_p):
    """Fully resident weights; one wide x-side MXU call (branch | shortcut)."""
    x = x_ref[...].astype(wx_ref.dtype)            # cast on the VPU, hidden under DMA/MXU
    # columns [0:fo_p)  = branch  (linear1 + bn1 folded)
    # columns [fo_p:2fo_p) = shortcut (linear_s + bn_s folded)
    t = jnp.dot(x, wx_ref[...], preferred_element_type=jnp.float32) + shx_ref[...]
    # fo_p % 128 == 0, so these are lane-tile-aligned views (no VMEM copies).
    h = jnp.maximum(t[:, :fo_p], 0.0)              # ReLU(bn1(linear1(x)))
    idn = t[:, fo_p:]                              # shortcut branch
    # Dropout: identity in eval mode.
    y = jnp.dot(h.astype(w2_ref.dtype), w2_ref[...],
                preferred_element_type=jnp.float32) + sh2_ref[...]   # bn2(linear2(h))
    o_ref[...] = jnp.maximum(y + idn, 0.0).astype(o_ref.dtype)


def _tiled_kernel(x_ref, w1_ref, sh1_ref, w2_ref, sh2_ref, ws_ref, shs_ref,
                  o_ref, acc_ref):
    """Weight-tiling fallback: grid = (batch, out-col tile j, k tile). Weights are
    streamed block-by-block; acc_ref accumulates h_k @ w2[k, j] over k."""
    k = pl.program_id(2)
    x = x_ref[...].astype(w1_ref.dtype)

    @pl.when(k == 0)
    def _():
        acc_ref[...] = (jnp.dot(x, ws_ref[...], preferred_element_type=jnp.float32)
                        + shs_ref[...] + sh2_ref[...])              # shortcut + bn2 shift

    h = jnp.maximum(
        jnp.dot(x, w1_ref[...], preferred_element_type=jnp.float32) + sh1_ref[...], 0.0)
    acc_ref[...] += jnp.dot(h.astype(w2_ref.dtype), w2_ref[...],
                            preferred_element_type=jnp.float32)

    @pl.when(k == pl.num_programs(2) - 1)
    def _():
        o_ref[...] = jnp.maximum(acc_ref[...], 0.0).astype(o_ref.dtype)


# ---------------------------------------------------------------------------
# One-time parameter preparation (model-setup time, not per call)
# ---------------------------------------------------------------------------
def fold_bn(gamma, beta, running_mean, running_var, eps=1e-5):
    """BatchNorm1d (eval) -> per-channel scale & shift."""
    scale = gamma / jnp.sqrt(running_var + eps)
    shift = beta - running_mean * scale
    return scale, shift


def prepare_residual_block(params, *, compute_dtype=jnp.bfloat16, force_tiled=False):
    """Fold BN into the Linear weights, pad to lane-dense shapes, and pick the
    execution mode. Call once at setup and reuse across invocations."""
    F_in, F_out = params["w1"].shape

    s1, h1 = fold_bn(params["bn1_gamma"], params["bn1_beta"],
                     params["bn1_mean"], params["bn1_var"])
    s2, h2 = fold_bn(params["bn2_gamma"], params["bn2_beta"],
                     params["bn2_mean"], params["bn2_var"])
    ss, hs = fold_bn(params["bns_gamma"], params["bns_beta"],
                     params["bns_mean"], params["bns_var"])

    w1f = params["w1"] * s1[None, :]
    sh1 = params["b1"] * s1 + h1
    w2f = params["w2"] * s2[None, :]
    sh2 = params["b2"] * s2 + h2
    wsf = params["ws"] * ss[None, :]
    shs = params["bs"] * ss + hs

    fi_p = _round_up(F_in, 128)
    fo_p = _round_up(F_out, 128)

    def pad2(a, rows, cols):
        return jnp.pad(a, ((0, rows - a.shape[0]), (0, cols - a.shape[1])))

    def padrow(v, cols):
        return jnp.pad(v, (0, cols - v.shape[0])).reshape(1, cols).astype(jnp.float32)

    budget = _vmem_budget_bytes()
    wbytes = jnp.dtype(compute_dtype).itemsize
    resident_bytes = (fi_p * 2 * fo_p + fo_p * fo_p) * wbytes + 3 * fo_p * 4
    tiled = bool(force_tiled) or resident_bytes > budget // 2

    prep = dict(F_in=F_in, F_out=F_out, fi_p=fi_p, fo_p=fo_p,
                compute_dtype=compute_dtype, tiled=tiled,
                vmem_budget=budget, resident_bytes=resident_bytes)

    if not tiled:
        # Fuse the two x-side matmuls: x @ [F_in, 2*F_out].
        prep["wx"] = jnp.concatenate([pad2(w1f, fi_p, fo_p), pad2(wsf, fi_p, fo_p)],
                                     axis=1).astype(compute_dtype)
        prep["shx"] = jnp.concatenate([padrow(sh1, fo_p), padrow(shs, fo_p)], axis=1)
        prep["w2"] = pad2(w2f, fo_p, fo_p).astype(compute_dtype)
        prep["sh2"] = padrow(sh2, fo_p)
    else:
        prep["w1"] = pad2(w1f, fi_p, fo_p).astype(compute_dtype)
        prep["sh1"] = padrow(sh1, fo_p)
        prep["w2"] = pad2(w2f, fo_p, fo_p).astype(compute_dtype)
        prep["sh2"] = padrow(sh2, fo_p)
        prep["ws"] = pad2(wsf, fi_p, fo_p).astype(compute_dtype)
        prep["shs"] = padrow(shs, fo_p)
    return prep


# ---------------------------------------------------------------------------
# Forward pass
# ---------------------------------------------------------------------------
def residual_block(x, prep, *, out_dtype=None, block_b=512,
                   block_n=None, block_k=None):
    B, F_in = x.shape
    assert F_in == prep["F_in"], "input feature dim mismatch with prepared params"
    F_out, fi_p, fo_p = prep["F_out"], prep["fi_p"], prep["fo_p"]
    out_dtype = prep["compute_dtype"] if out_dtype is None else out_dtype
    budget = prep["vmem_budget"]

    x_isz = x.dtype.itemsize
    o_isz = jnp.dtype(out_dtype).itemsize
    w_isz = jnp.dtype(prep["compute_dtype"]).itemsize

    if not prep["tiled"]:
        # ---------------- resident-weight (fused) path ----------------
        # per-batch-row VMEM: 2x-buffered x, 2x-buffered out, f32 intermediates.
        per_row = 2 * fi_p * x_isz + 2 * fo_p * o_isz + 4 * fo_p * 4 + fo_p * 2
        avail = budget - prep["resident_bytes"]
        tb = _pick_batch_tile(B, per_row, avail, target=block_b)
        b_p = _round_up(B, tb)
        # Feed both TensorCores (v7x megacore): ensure >= 2 parallel grid steps.
        if b_p // tb < 2 and tb >= 32:
            tb = _round_up(tb // 2, 16)
            b_p = _round_up(B, tb)
        grid = (b_p // tb,)

        # Only pad when needed; never pre-cast (cast happens on the VPU in-kernel).
        x_in = x if (b_p == B and fi_p == F_in) else jnp.pad(
            x, ((0, b_p - B), (0, fi_p - F_in)))

        flops = 2 * b_p * (fi_p * 2 * fo_p + fo_p * fo_p)
        bytes_accessed = (x_in.size * x_isz
                          + prep["wx"].size * w_isz + prep["w2"].size * w_isz
                          + prep["shx"].size * 4 + prep["sh2"].size * 4
                          + b_p * fo_p * o_isz)
        est_vmem = prep["resident_bytes"] + tb * per_row
        vmem_limit = int(min(max(est_vmem * 5 // 4, 32 * 1024 * 1024), budget))

        # Constant index_map operands: single-buffer them (no pointless 2x copy).
        resident = functools.partial(pl.BlockSpec, pipeline_mode=pl.Buffered(1))

        out_p = pl.pallas_call(
            functools.partial(_fused_kernel, fo_p=fo_p),
            out_shape=jax.ShapeDtypeStruct((b_p, fo_p), out_dtype),
            grid=grid,
            in_specs=[
                pl.BlockSpec((tb, fi_p), lambda i: (i, 0)),       # x: tiled over batch
                resident((fi_p, 2 * fo_p), lambda i: (0, 0)),     # fused w1|ws (resident)
                resident((1, 2 * fo_p), lambda i: (0, 0)),        # fused shift1|shift_s
                resident((fo_p, fo_p), lambda i: (0, 0)),         # w2 (resident)
                resident((1, fo_p), lambda i: (0, 0)),            # shift2
            ],
            out_specs=pl.BlockSpec((tb, fo_p), lambda i: (i, 0)),
            compiler_params=pltpu.CompilerParams(
                dimension_semantics=("parallel",),
                vmem_limit_bytes=vmem_limit),
            cost_estimate=pl.CostEstimate(flops=int(flops), transcendentals=0,
                                          bytes_accessed=int(bytes_accessed)),
        )(x_in, prep["wx"], prep["shx"], prep["w2"], prep["sh2"])

    else:
        # ---------------- weight-tiling fallback path ----------------
        tn = block_n or _pick_col_tile(fo_p)
        tk = block_k or _pick_col_tile(fo_p)
        assert fo_p % tn == 0 and tn % 128 == 0
        assert fo_p % tk == 0 and tk % 128 == 0
        nn, nk = fo_p // tn, fo_p // tk

        w_blocks = 2 * (fi_p * tk + tk * tn + fi_p * tn) * w_isz   # double-buffered
        per_row = 2 * fi_p * x_isz + 2 * tn * o_isz + tn * 4 + tk * 4 + tk * 2
        avail = budget - w_blocks
        tb = _pick_batch_tile(B, per_row, avail, target=block_b)
        b_p = _round_up(B, tb)
        if (b_p // tb) * nn < 2 and tb >= 32:                      # megacore: >=2 parallel steps
            tb = _round_up(tb // 2, 16)
            b_p = _round_up(B, tb)
        nb = b_p // tb
        grid = (nb, nn, nk)

        x_in = x if (b_p == B and fi_p == F_in) else jnp.pad(
            x, ((0, b_p - B), (0, fi_p - F_in)))

        flops = 2 * b_p * (fi_p * fo_p * (nn + 1) + fo_p * fo_p)
        bytes_accessed = (x_in.size * x_isz
                          + nb * (prep["w1"].size * nn + prep["w2"].size
                                  + prep["ws"].size) * w_isz
                          + 3 * fo_p * 4 + b_p * fo_p * o_isz)
        est_vmem = w_blocks + tb * per_row + 3 * tn * 4 + tk * 4
        vmem_limit = int(min(max(est_vmem * 5 // 4, 32 * 1024 * 1024), budget))

        out_p = pl.pallas_call(
            _tiled_kernel,
            out_shape=jax.ShapeDtypeStruct((b_p, fo_p), out_dtype),
            grid=grid,
            in_specs=[
                pl.BlockSpec((tb, fi_p), lambda i, j, k: (i, 0)),     # x
                pl.BlockSpec((fi_p, tk), lambda i, j, k: (0, k)),     # w1 block
                pl.BlockSpec((1, tk), lambda i, j, k: (0, k)),        # shift1 block
                pl.BlockSpec((tk, tn), lambda i, j, k: (k, j)),       # w2 block
                pl.BlockSpec((1, tn), lambda i, j, k: (0, j)),        # shift2 block
                pl.BlockSpec((fi_p, tn), lambda i, j, k: (0, j)),     # ws block
                pl.BlockSpec((1, tn), lambda i, j, k: (0, j)),        # shift_s block
            ],
            out_specs=pl.BlockSpec((tb, tn), lambda i, j, k: (i, j)),
            scratch_shapes=[pltpu.VMEM((tb, tn), jnp.float32)],
            compiler_params=pltpu.CompilerParams(
                dimension_semantics=("parallel", "parallel", "arbitrary"),
                vmem_limit_bytes=vmem_limit),
            cost_estimate=pl.CostEstimate(flops=int(flops), transcendentals=0,
                                          bytes_accessed=int(bytes_accessed)),
        )(x_in, prep["w1"], prep["sh1"], prep["w2"], prep["sh2"],
          prep["ws"], prep["shs"])

    return out_p[:B, :F_out]


# ---------------------------------------------------------------------------
# Params + pure-JAX reference (same eval semantics & same bf16 matmul inputs)
# ---------------------------------------------------------------------------
def init_params(key, in_features, out_features):
    ks = jax.random.split(key, 8)
    f32 = jnp.float32

    def bn_stats(k, n):
        k1, k2, k3, k4 = jax.random.split(k, 4)
        gamma = 1.0 + 0.1 * jax.random.normal(k1, (n,), f32)
        beta = 0.1 * jax.random.normal(k2, (n,), f32)
        mean = 0.1 * jax.random.normal(k3, (n,), f32)
        var = 1.0 + 0.1 * jnp.abs(jax.random.normal(k4, (n,), f32))
        return gamma, beta, mean, var

    # Linear weights stored already transposed: [F_in, F_out].
    w1 = 0.1 * jax.random.normal(ks[0], (in_features, out_features), f32)
    b1 = 0.1 * jax.random.normal(ks[1], (out_features,), f32)
    w2 = 0.1 * jax.random.normal(ks[2], (out_features, out_features), f32)
    b2 = 0.1 * jax.random.normal(ks[3], (out_features,), f32)
    ws = 0.1 * jax.random.normal(ks[4], (in_features, out_features), f32)
    bs = 0.1 * jax.random.normal(ks[5], (out_features,), f32)

    g1, be1, m1, v1 = bn_stats(ks[6], out_features)
    g2, be2, m2, v2 = bn_stats(ks[7], out_features)
    gs, bes, ms, vs = bn_stats(jax.random.fold_in(key, 99), out_features)

    return dict(
        w1=w1, b1=b1, w2=w2, b2=b2, ws=ws, bs=bs,
        bn1_gamma=g1, bn1_beta=be1, bn1_mean=m1, bn1_var=v1,
        bn2_gamma=g2, bn2_beta=be2, bn2_mean=m2, bn2_var=v2,
        bns_gamma=gs, bns_beta=bes, bns_mean=ms, bns_var=vs,
    )


def reference(x, params, compute_dtype=jnp.bfloat16):
    """Pure-JAX reference mirroring the kernel's folded-BN, bf16-matmul math."""
    s1, h1 = fold_bn(params["bn1_gamma"], params["bn1_beta"],
                     params["bn1_mean"], params["bn1_var"])
    s2, h2 = fold_bn(params["bn2_gamma"], params["bn2_beta"],
                     params["bn2_mean"], params["bn2_var"])
    ss, hs = fold_bn(params["bns_gamma"], params["bns_beta"],
                     params["bns_mean"], params["bns_var"])
    w1f = (params["w1"] * s1[None, :]).astype(compute_dtype)
    w2f = (params["w2"] * s2[None, :]).astype(compute_dtype)
    wsf = (params["ws"] * ss[None, :]).astype(compute_dtype)
    sh1 = params["b1"] * s1 + h1
    sh2 = params["b2"] * s2 + h2
    shs = params["bs"] * ss + hs
    xb = x.astype(compute_dtype)
    h = jnp.maximum(jnp.dot(xb, w1f, preferred_element_type=jnp.float32) + sh1, 0.0)
    idn = jnp.dot(xb, wsf, preferred_element_type=jnp.float32) + shs
    y = jnp.dot(h.astype(compute_dtype), w2f,
                preferred_element_type=jnp.float32) + sh2
    return jnp.maximum(y + idn, 0.0)


if __name__ == "__main__":
    key = jax.random.PRNGKey(0)

    # --- resident-weight (fused) path -------------------------------------
    B, F_IN, F_OUT = 8, 32, 64
    kx, kp = jax.random.split(key)
    x = jax.random.normal(kx, (B, F_IN), jnp.float32)
    params = init_params(kp, F_IN, F_OUT)

    prep = prepare_residual_block(params)          # one-time setup (weights folded once)
    out = jax.block_until_ready(residual_block(x, prep))
    ref = reference(x, params)
    assert out.shape == (B, F_OUT)
    assert jnp.allclose(out.astype(jnp.float32), ref, atol=2e-2, rtol=2e-2), \
        "fused-path mismatch vs JAX reference"

    # --- weight-tiling fallback path (forced, small shapes) ----------------
    B2, F_IN2, F_OUT2 = 24, 40, 200
    kx2, kp2 = jax.random.split(jax.random.fold_in(key, 1))
    x2 = jax.random.normal(kx2, (B2, F_IN2), jnp.float32)
    params2 = init_params(kp2, F_IN2, F_OUT2)
    prep2 = prepare_residual_block(params2, force_tiled=True)
    out2 = jax.block_until_ready(
        residual_block(x2, prep2, block_n=128, block_k=128))
    ref2 = reference(x2, params2)
    assert out2.shape == (B2, F_OUT2)
    assert jnp.allclose(out2.astype(jnp.float32), ref2, atol=2e-2, rtol=2e-2), \
        "tiled-path mismatch vs JAX reference"

    print("KERNEL_OK")
</pallas_src>

<mosaic_0001>
module attributes {stable_mosaic.version = 11 : i64} {
  func.func @_fused_kernel(%arg0: i32, %arg1: memref<16x128xf32, #tpu.memory_space<vmem>>, %arg2: memref<128x256xbf16, #tpu.memory_space<vmem>>, %arg3: memref<1x256xf32, #tpu.memory_space<vmem>>, %arg4: memref<128x128xbf16, #tpu.memory_space<vmem>>, %arg5: memref<1x128xf32, #tpu.memory_space<vmem>>, %arg6: memref<16x128xbf16, #tpu.memory_space<vmem>>) attributes {dimension_semantics = [#tpu.dimension_semantics<parallel>], iteration_bounds = array<i64: 1>, scalar_prefetch = 0 : i64, scratch_operands = 0 : i64, tpu.core_type = #tpu.core_type<tc>, window_params = [{transform_indices = @transform_0, window_bounds = array<i64: 16, 128>}, {pipeline_mode = #tpu.pipeline_mode<synchronous>, transform_indices = @transform_1, window_bounds = array<i64: 128, 256>}, {pipeline_mode = #tpu.pipeline_mode<synchronous>, transform_indices = @transform_2, window_bounds = array<i64: 1, 256>}, {pipeline_mode = #tpu.pipeline_mode<synchronous>, transform_indices = @transform_3, window_bounds = array<i64: 128, 128>}, {pipeline_mode = #tpu.pipeline_mode<synchronous>, transform_indices = @transform_4, window_bounds = array<i64: 1, 128>}, {transform_indices = @transform_5, window_bounds = array<i64: 16, 128>}]} {
    %c0 = arith.constant 0 : index
    %c0_0 = arith.constant 0 : index
    %0 = vector.load %arg1[%c0, %c0_0] : memref<16x128xf32, #tpu.memory_space<vmem>>, vector<16x128xf32>
    %1 = arith.truncf %0 : vector<16x128xf32> to vector<16x128xbf16>
    %c0_1 = arith.constant 0 : index
    %c0_2 = arith.constant 0 : index
    %2 = vector.load %arg2[%c0_1, %c0_2] : memref<128x256xbf16, #tpu.memory_space<vmem>>, vector<128x256xbf16>
    %cst = arith.constant dense<0.000000e+00> : vector<16x256xf32>
    %3 = tpu.matmul %1, %2, %cst {dimension_numbers = #tpu.dot_dimension_numbers<[1], [0], [0], [1], [0, 0, 1, 1], [], []>} : vector<16x128xbf16>, vector<128x256xbf16>, vector<16x256xf32> -> vector<16x256xf32>
    %c0_3 = arith.constant 0 : index
    %c0_4 = arith.constant 0 : index
    %4 = vector.load %arg3[%c0_3, %c0_4] : memref<1x256xf32, #tpu.memory_space<vmem>>, vector<1x256xf32>
    %5 = vector.broadcast %4 : vector<1x256xf32> to vector<16x256xf32>
    %6 = arith.addf %3, %5 : vector<16x256xf32>
    %7 = vector.extract_strided_slice %6 {offsets = [0, 0], sizes = [16, 128], strides = [1, 1]} : vector<16x256xf32> to vector<16x128xf32>
    %cst_5 = arith.constant 0.000000e+00 : f32
    %8 = vector.broadcast %cst_5 : f32 to vector<16x128xf32>
    %9 = arith.maximumf %7, %8 : vector<16x128xf32>
    %10 = vector.extract_strided_slice %6 {offsets = [0, 128], sizes = [16, 128], strides = [1, 1]} : vector<16x256xf32> to vector<16x128xf32>
    %11 = arith.truncf %9 : vector<16x128xf32> to vector<16x128xbf16>
    %c0_6 = arith.constant 0 : index
    %c0_7 = arith.constant 0 : index
    %12 = vector.load %arg4[%c0_6, %c0_7] : memref<128x128xbf16, #tpu.memory_space<vmem>>, vector<128x128xbf16>
    %cst_8 = arith.constant dense<0.000000e+00> : vector<16x128xf32>
    %13 = tpu.matmul %11, %12, %cst_8 {dimension_numbers = #tpu.dot_dimension_numbers<[1], [0], [0], [1], [0, 0, 1, 1], [], []>} : vector<16x128xbf16>, vector<128x128xbf16>, vector<16x128xf32> -> vector<16x128xf32>
    %c0_9 = arith.constant 0 : index
    %c0_10 = arith.constant 0 : index
    %14 = vector.load %arg5[%c0_9, %c0_10] : memref<1x128xf32, #tpu.memory_space<vmem>>, vector<1x128xf32>
    %15 = vector.broadcast %14 : vector<1x128xf32> to vector<16x128xf32>
    %16 = arith.addf %13, %15 : vector<16x128xf32>
    %17 = arith.addf %16, %10 : vector<16x128xf32>
    %cst_11 = arith.constant 0.000000e+00 : f32
    %18 = vector.broadcast %cst_11 : f32 to vector<16x128xf32>
    %19 = arith.maximumf %17, %18 : vector<16x128xf32>
    %20 = arith.truncf %19 : vector<16x128xf32> to vector<16x128xbf16>
    %c0_12 = arith.constant 0 : index
    %c0_13 = arith.constant 0 : index
    %21 = vector.load %arg6[%c0_12, %c0_13] : memref<16x128xbf16, #tpu.memory_space<vmem>>, vector<16x128xbf16>
    tpu.vector_store %arg6[%c0_12, %c0_13], %20 {strides = array<i32>} : memref<16x128xbf16, #tpu.memory_space<vmem>>, vector<16x128xbf16>,
    return
  }
  func.func @transform_0(%arg0: i32) -> (i32, i32) {
    %c0_i32 = arith.constant 0 : i32
    %c0_i32_0 = arith.constant 0 : i32
    return %arg0, %c0_i32 : i32, i32
  }
  func.func @transform_1(%arg0: i32) -> (i32, i32) {
    %c0_i32 = arith.constant 0 : i32
    %c0_i32_0 = arith.constant 0 : i32
    %c0_i32_1 = arith.constant 0 : i32
    return %c0_i32, %c0_i32_0 : i32, i32
  }
  func.func @transform_2(%arg0: i32) -> (i32, i32) {
    %c0_i32 = arith.constant 0 : i32
    %c0_i32_0 = arith.constant 0 : i32
    %c0_i32_1 = arith.constant 0 : i32
    return %c0_i32, %c0_i32_0 : i32, i32
  }
  func.func @transform_3(%arg0: i32) -> (i32, i32) {
    %c0_i32 = arith.constant 0 : i32
    %c0_i32_0 = arith.constant 0 : i32
    %c0_i32_1 = arith.constant 0 : i32
    return %c0_i32, %c0_i32_0 : i32, i32
  }
  func.func @transform_4(%arg0: i32) -> (i32, i32) {
    %c0_i32 = arith.constant 0 : i32
    %c0_i32_0 = arith.constant 0 : i32
    %c0_i32_1 = arith.constant 0 : i32
    return %c0_i32, %c0_i32_0 : i32, i32
  }
  func.func @transform_5(%arg0: i32) -> (i32, i32) {
    %c0_i32 = arith.constant 0 : i32
    %c0_i32_0 = arith.constant 0 : i32
    return %arg0, %c0_i32 : i32, i32
  }
}

</mosaic_0001>

<llo_original>
// kernel: tpu_custom_call.1
$region0: #{tpu_custom_call.1}
  #allocation0 [shape = 'u32[]', space=smem, size = 0x4, offset = 0x4, fixed_abs, tag = 'smem constant byte address 0x4 - core index']
  #allocation1 [shape = 'u32[144,128]{1,0:T(1,128)}', space=vmem, size = 0x12000, scoped, tag = 'internal scratch']
  %s0 = inlined_call_operand.hbm [shape: f32[16,128], index: 0, kind: input, shape index: {}]
  %s1 = inlined_call_operand.hbm [shape: bf16[128,256], index: 1, kind: input, shape index: {}]
  %s2 = inlined_call_operand.vmem [shape: f32[1,256], index: 2, kind: input, shape index: {}]
  %s3 = inlined_call_operand.hbm [shape: bf16[128,128], index: 3, kind: input, shape index: {}]
  %s4 = inlined_call_operand.vmem [shape: f32[1,128], index: 4, kind: input, shape index: {}]
  %s5 = inlined_call_operand.hbm [shape: bf16[16,128], index: 5, kind: output, shape index: {}]
  %s6 = sld [smem:[#allocation0]]
  $region42: #{tpu_custom_call.1} parent=0
    _
  %s8 = ssub.s32 1, %s6
  %s9 = scalar_select 0, %s8, %s6
  $region1: #{tpu_custom_call.1} parent=0
    #allocation2 [shape = 'u8[8192]{0}', space=vmem, size = 0x2000, scoped, tag = 'input window, operand 0, single buffered']
    #allocation3 [shape = 's32[1]{0}', space=sflag, size = 0x4, scoped, tag = 'scoped memory for tpu_custom_call.1']
    #allocation4 [shape = 's32[1]{0}', space=sflag, size = 0x4, scoped, tag = 'scoped memory for tpu_custom_call.1']
    #allocation5 [shape = 'u8[65536]{0}', space=vmem, size = 0x10000, scoped, tag = 'input window, operand 1, single buffered']
    #allocation6 [shape = 's32[1]{0}', space=sflag, size = 0x4, scoped, tag = 'scoped memory for tpu_custom_call.1']
    #allocation7 [shape = 'u8[32768]{0}', space=vmem, size = 0x8000, scoped, tag = 'input window, operand 3, single buffered']
    #allocation8 [shape = 'u8[4096]{0}', space=vmem, size = 0x1000, scoped, tag = 'output window, operand 0, single buffered']
    %10 = vsyncpa [#allocation3], 0
    %11 = vsyncpa [#allocation6], 0
    %12 = vsyncpa [#allocation4], 0
    // Predicated region
    $region2: #{tpu_custom_call.1} parent=1 // pred_check
      _
    $region3: #{tpu_custom_call.1} parent=1 // pred_check_branch
      %14 = sbr.rel (0) target = $region5
    $region4: #{tpu_custom_call.1} parent=1 // pred_region
      %s16 = ssub.s32 256, 256
      %17 = vsyncadd [#allocation3], %s16
      %s18 = sshll.u32 [#allocation2], 4
      %s19 = int_to_ptr.vmem [resolvable:$true] %s18
      %24 = dma.hbm_to_vmem [thread:$0]  %s0, 256, %s19, [#allocation3], 128, 128, 8
    $region5: #{tpu_custom_call.1} parent=1 // pred_fallthru
      _
    // Predicated region
    $region6: #{tpu_custom_call.1} parent=1 // pred_check
      _
    $region7: #{tpu_custom_call.1} parent=1 // pred_check_branch
      %26 = sbr.rel (0) target = $region9
    $region8: #{tpu_custom_call.1} parent=1 // pred_region
      %s28 = ssub.s32 2048, 2048
      %29 = vsyncadd [#allocation6], %s28
      %s30 = sshll.u32 [#allocation5], 4
      %s31 = int_to_ptr.vmem [resolvable:$true] %s30
      %36 = dma.hbm_to_vmem [thread:$0]  %s1, 2048, %s31, [#allocation6], 128, 128, 8
    $region9: #{tpu_custom_call.1} parent=1 // pred_fallthru
      _
    // Predicated region
    $region10: #{tpu_custom_call.1} parent=1 // pred_check
      _
    $region11: #{tpu_custom_call.1} parent=1 // pred_check_branch
      %38 = sbr.rel (0) target = $region13
    $region12: #{tpu_custom_call.1} parent=1 // pred_region
      _
    $region13: #{tpu_custom_call.1} parent=1 // pred_fallthru
      _
    // Predicated region
    $region14: #{tpu_custom_call.1} parent=1 // pred_check
      _
    $region15: #{tpu_custom_call.1} parent=1 // pred_check_branch
      %40 = sbr.rel (0) target = $region17
    $region16: #{tpu_custom_call.1} parent=1 // pred_region
      %s42 = ssub.s32 1024, 1024
      %43 = vsyncadd [#allocation6], %s42
      %s44 = sshll.u32 [#allocation7], 4
      %s45 = int_to_ptr.vmem [resolvable:$true] %s44
      %50 = dma.hbm_to_vmem [thread:$0]  %s3, 1024, %s45, [#allocation6], 64, 64, 4
    $region17: #{tpu_custom_call.1} parent=1 // pred_fallthru
      _
    // Predicated region
    $region18: #{tpu_custom_call.1} parent=1 // pred_check
      _
    $region19: #{tpu_custom_call.1} parent=1 // pred_check_branch
      %52 = sbr.rel (0) target = $region21
    $region20: #{tpu_custom_call.1} parent=1 // pred_region
      _
    $region21: #{tpu_custom_call.1} parent=1 // pred_fallthru
      _
    // Predicated region
    $region22: #{tpu_custom_call.1} parent=1 // pred_check
      _
    $region23: #{tpu_custom_call.1} parent=1 // pred_check_branch
      %54 = sbr.rel (0) target = $region25
    $region24: #{tpu_custom_call.1} parent=1 // pred_region
      %55 = dma.done [#allocation3], 256
    $region25: #{tpu_custom_call.1} parent=1 // pred_fallthru
      _
    // Predicated region
    $region26: #{tpu_custom_call.1} parent=1 // pred_check
      _
    $region27: #{tpu_custom_call.1} parent=1 // pred_check_branch
      %57 = sbr.rel (0) target = $region29
    $region28: #{tpu_custom_call.1} parent=1 // pred_region
      %58 = dma.done [#allocation6], 2048
    $region29: #{tpu_custom_call.1} parent=1 // pred_fallthru
      _
    // Predicated region
    $region30: #{tpu_custom_call.1} parent=1 // pred_check
      _
    $region31: #{tpu_custom_call.1} parent=1 // pred_check_branch
      %60 = sbr.rel (0) target = $region33
    $region32: #{tpu_custom_call.1} parent=1 // pred_region
      %61 = dma.done [#allocation6], 1024
    $region33: #{tpu_custom_call.1} parent=1 // pred_fallthru
      _
    %v63 = vld [vmem:[#allocation2] sm:$0xff]
    %v64 = vld [vmem:[#allocation2 + $0x8] sm:$0xff]
    %v65 = vpack.c.bf16 %v64, %v63
    %v66 = vld [vmem:[#allocation5] sm:$0xff]
    %v67 = vld [vmem:[#allocation5 + $0x8] sm:$0xff]
    %v68 = vld [vmem:[#allocation5 + $0x10] sm:$0xff]
    %v69 = vld [vmem:[#allocation5 + $0x18] sm:$0xff]
    %v70 = vld [vmem:[#allocation5 + $0x20] sm:$0xff]
    %v71 = vld [vmem:[#allocation5 + $0x28] sm:$0xff]
    %v72 = vld [vmem:[#allocation5 + $0x30] sm:$0xff]
    %v73 = vld [vmem:[#allocation5 + $0x38] sm:$0xff]
    %v74 = vld [vmem:[#allocation5 + $0x40] sm:$0xff]
    %v75 = vld [vmem:[#allocation5 + $0x48] sm:$0xff]
    %v76 = vld [vmem:[#allocation5 + $0x50] sm:$0xff]
    %v77 = vld [vmem:[#allocation5 + $0x58] sm:$0xff]
    %v78 = vld [vmem:[#allocation5 + $0x60] sm:$0xff]
    %v79 = vld [vmem:[#allocation5 + $0x68] sm:$0xff]
    %v80 = vld [vmem:[#allocation5 + $0x70] sm:$0xff]
    %v81 = vld [vmem:[#allocation5 + $0x78] sm:$0xff]
    %v82 = vld [vmem:[%s2] sm:$0x3]
    %v84 = vlaneseq
    %v85 = vshrl.u32 %v84, 7
    %v86 = vsub.s32 0, %v85
    %v87 = vrot.slane %v82, %v86
    %v88 = vlaneseq
    %v89 = vshrl.u32 %v88, 7
    %v90 = vsub.s32 1, %v89
    %v91 = vrot.slane %v82, %v90
    %v110 = vunpack.c.l.b16 %v66
    %v111 = vunpack.c.h.b16 %v66
    %v112 = vunpack.c.l.b16 %v67
    %v113 = vunpack.c.h.b16 %v67
    %v114 = vunpack.c.l.b16 %v68
    %v115 = vunpack.c.h.b16 %v68
    %v116 = vunpack.c.l.b16 %v69
    %v117 = vunpack.c.h.b16 %v69
    %v118 = vunpack.c.l.b16 %v70
    %v119 = vunpack.c.h.b16 %v70
    %v120 = vunpack.c.l.b16 %v71
    %v121 = vunpack.c.h.b16 %v71
    %v122 = vunpack.c.l.b16 %v72
    %v123 = vunpack.c.h.b16 %v72
    %v124 = vunpack.c.l.b16 %v73
    %v125 = vunpack.c.h.b16 %v73
    %v126 = vunpack.c.l.b16 %v74
    %v127 = vunpack.c.h.b16 %v74
    %v128 = vunpack.c.l.b16 %v75
    %v129 = vunpack.c.h.b16 %v75
    %v130 = vunpack.c.l.b16 %v76
    %v131 = vunpack.c.h.b16 %v76
    %v132 = vunpack.c.l.b16 %v77
    %v133 = vunpack.c.h.b16 %v77
    %v134 = vunpack.c.l.b16 %v78
    %v135 = vunpack.c.h.b16 %v78
    %v136 = vunpack.c.l.b16 %v79
    %v137 = vunpack.c.h.b16 %v79
    %v138 = vunpack.c.l.b16 %v80
    %v139 = vunpack.c.h.b16 %v80
    %v140 = vunpack.c.l.b16 %v81
    %v141 = vunpack.c.h.b16 %v81
    %v142 = vpack.c.b16 %v112, %v110
    %v143 = vpack.c.b16 %v113, %v111
    %v144 = vpack.c.b16 %v116, %v114
    %v145 = vpack.c.b16 %v117, %v115
    %v146 = vpack.c.b16 %v120, %v118
    %v147 = vpack.c.b16 %v121, %v119
    %v148 = vpack.c.b16 %v124, %v122
    %v149 = vpack.c.b16 %v125, %v123
    %v150 = vpack.c.b16 %v128, %v126
    %v151 = vpack.c.b16 %v129, %v127
    %v152 = vpack.c.b16 %v132, %v130
    %v153 = vpack.c.b16 %v133, %v131
    %v154 = vpack.c.b16 %v136, %v134
    %v155 = vpack.c.b16 %v137, %v135
    %v156 = vpack.c.b16 %v140, %v138
    %v157 = vpack.c.b16 %v141, %v139
    %174 = vmatprep.subr.bf16.mxu0 %v143
    %175 = vmatpush1.bf16.msra.mxu0 %v142
    %176 = vmatprep.subr.bf16.mxu0 %v145
    %177 = vmatpush1.bf16.msra.mxu0 %v144
    %178 = vmatprep.subr.bf16.mxu0 %v147
    %179 = vmatpush1.bf16.msra.mxu0 %v146
    %180 = vmatprep.subr.bf16.mxu0 %v149
    %181 = vmatpush1.bf16.msra.mxu0 %v148
    %182 = vmatprep.subr.bf16.mxu0 %v151
    %183 = vmatpush1.bf16.msra.mxu0 %v150
    %184 = vmatprep.subr.bf16.mxu0 %v153
    %185 = vmatpush1.bf16.msra.mxu0 %v152
    %186 = vmatprep.subr.bf16.mxu0 %v155
    %187 = vmatpush1.bf16.msra.mxu0 %v154
    %188 = vmatprep.subr.bf16.mxu0 %v157
    %189 = vmatpush1.bf16.msra.mxu0 %v156
    %190 = vmatprep.subr.bf16.mxu0 0
    %191 = vmatpush1.bf16.msra.mxu0 0
    %192 = vmatprep.subr.bf16.mxu0 0
    %193 = vmatpush1.bf16.msra.mxu0 0
    %194 = vmatprep.subr.bf16.mxu0 0
    %195 = vmatpush1.bf16.msra.mxu0 0
    %196 = vmatprep.subr.bf16.mxu0 0
    %197 = vmatpush1.bf16.msra.mxu0 0
    %198 = vmatprep.subr.bf16.mxu0 0
    %199 = vmatpush1.bf16.msra.mxu0 0
    %200 = vmatprep.subr.bf16.mxu0 0
    %201 = vmatpush1.bf16.msra.mxu0 0
    %202 = vmatprep.subr.bf16.mxu0 0
    %203 = vmatpush1.bf16.msra.mxu0 0
    %204 = vmatprep.subr.bf16.mxu0 0
    %205 = vmatpush1.bf16.msra.mxu0 0
    %206 = vmatprep.mubr.bf16.mxu0 0
    %207 = vmatmul.mubr.bf16.gmra.mrb[0].mxu0 %v65
    %v208 = vpop.f32.mrb[0].mxu0
    %v209 = vadd.f32 %v87, %v208
    %v210 = vpop.f32.mrb[0].mxu0
    %v211 = vadd.f32 %v91, %v210
    %v212 = vpop.f32.mrb[0].mxu0
    %v213 = vadd.f32 %v87, %v212
    %v214 = vpop.f32.mrb[0].mxu0
    %v215 = vadd.f32 %v91, %v214
    %216 = vdwg.mxu0
    %v217 = vmax.f32 %v209, 0.0
    %v218 = vmax.f32 %v213, 0.0
    %v219 = vpack.c.bf16 %v218, %v217
    %v220 = vld [vmem:[#allocation7] sm:$0xf]
    %v221 = vld [vmem:[#allocation7 + $0x4] sm:$0xf]
    %v222 = vld [vmem:[#allocation7 + $0x8] sm:$0xf]
    %v223 = vld [vmem:[#allocation7 + $0xc] sm:$0xf]
    %v224 = vld [vmem:[#allocation7 + $0x10] sm:$0xf]
    %v225 = vld [vmem:[#allocation7 + $0x14] sm:$0xf]
    %v226 = vld [vmem:[#allocation7 + $0x18] sm:$0xf]
    %v227 = vld [vmem:[#allocation7 + $0x1c] sm:$0xf]
    %v228 = vld [vmem:[#allocation7 + $0x20] sm:$0xf]
    %v229 = vld [vmem:[#allocation7 + $0x24] sm:$0xf]
    %v230 = vld [vmem:[#allocation7 + $0x28] sm:$0xf]
    %v231 = vld [vmem:[#allocation7 + $0x2c] sm:$0xf]
    %v232 = vld [vmem:[#allocation7 + $0x30] sm:$0xf]
    %v233 = vld [vmem:[#allocation7 + $0x34] sm:$0xf]
    %v234 = vld [vmem:[#allocation7 + $0x38] sm:$0xf]
    %v235 = vld [vmem:[#allocation7 + $0x3c] sm:$0xf]
    %v236 = vld [vmem:[%s4] sm:$0x1]
    %v238 = vlaneseq
    %v239 = vshrl.u32 %v238, 7
    %v240 = vsub.s32 0, %v239
    %v241 = vrot.slane %v236, %v240
    %v259 = vunpack.c.l.b16 %v220
    %v260 = vunpack.c.l.b16 %v221
    %v261 = vunpack.c.l.b16 %v222
    %v262 = vunpack.c.l.b16 %v223
    %v263 = vunpack.c.l.b16 %v224
    %v264 = vunpack.c.l.b16 %v225
    %v265 = vunpack.c.l.b16 %v226
    %v266 = vunpack.c.l.b16 %v227
    %v267 = vunpack.c.l.b16 %v228
    %v268 = vunpack.c.l.b16 %v229
    %v269 = vunpack.c.l.b16 %v230
    %v270 = vunpack.c.l.b16 %v231
    %v271 = vunpack.c.l.b16 %v232
    %v272 = vunpack.c.l.b16 %v233
    %v273 = vunpack.c.l.b16 %v234
    %v274 = vunpack.c.l.b16 %v235
    %v275 = vpack.c.b16 %v260, %v259
    %v276 = vpack.c.b16 %v262, %v261
    %v277 = vpack.c.b16 %v264, %v263
    %v278 = vpack.c.b16 %v266, %v265
    %v279 = vpack.c.b16 %v268, %v267
    %v280 = vpack.c.b16 %v270, %v269
    %v281 = vpack.c.b16 %v272, %v271
    %v282 = vpack.c.b16 %v274, %v273
    %291 = vmatprep.subr.bf16.mxu0 0
    %292 = vmatpush1.bf16.msra.mxu0 %v275
    %293 = vmatprep.subr.bf16.mxu0 0
    %294 = vmatpush1.bf16.msra.mxu0 %v276
    %295 = vmatprep.subr.bf16.mxu0 0
    %296 = vmatpush1.bf16.msra.mxu0 %v277
    %297 = vmatprep.subr.bf16.mxu0 0
    %298 = vmatpush1.bf16.msra.mxu0 %v278
    %299 = vmatprep.subr.bf16.mxu0 0
    %300 = vmatpush1.bf16.msra.mxu0 %v279
    %301 = vmatprep.subr.bf16.mxu0 0
    %302 = vmatpush1.bf16.msra.mxu0 %v280
    %303 = vmatprep.subr.bf16.mxu0 0
    %304 = vmatpush1.bf16.msra.mxu0 %v281
    %305 = vmatprep.subr.bf16.mxu0 0
    %306 = vmatpush1.bf16.msra.mxu0 %v282
    %307 = vmatprep.subr.bf16.mxu0 0
    %308 = vmatpush1.bf16.msra.mxu0 0
    %309 = vmatprep.subr.bf16.mxu0 0
    %310 = vmatpush1.bf16.msra.mxu0 0
    %311 = vmatprep.subr.bf16.mxu0 0
    %312 = vmatpush1.bf16.msra.mxu0 0
    %313 = vmatprep.subr.bf16.mxu0 0
    %314 = vmatpush1.bf16.msra.mxu0 0
    %315 = vmatprep.subr.bf16.mxu0 0
    %316 = vmatpush1.bf16.msra.mxu0 0
    %317 = vmatprep.subr.bf16.mxu0 0
    %318 = vmatpush1.bf16.msra.mxu0 0
    %319 = vmatprep.subr.bf16.mxu0 0
    %320 = vmatpush1.bf16.msra.mxu0 0
    %321 = vmatprep.subr.bf16.mxu0 0
    %322 = vmatpush1.bf16.msra.mxu0 0
    %323 = vmatprep.mubr.bf16.mxu0 0
    %324 = vmatmul.mubr.bf16.gmra.mrb[0].mxu0 %v219
    %v325 = vpop.f32.mrb[0].mxu0
    %v326 = vadd.f32 %v241, %v325
    %v327 = vpop.f32.mrb[0].mxu0
    %v328 = vpop.f32.mrb[0].mxu0
    %v329 = vadd.f32 %v241, %v328
    %v330 = vpop.f32.mrb[0].mxu0
    %331 = vdwg.mxu0
    %v332 = vadd.f32 %v326, %v211
    %v333 = vadd.f32 %v329, %v215
    %v334 = vmax.f32 %v332, 0.0
    %v335 = vmax.f32 %v333, 0.0
    %v336 = vpack.c.bf16 %v335, %v334
    %v338 = vunpack.c.l.b16 %v336
    %v339 = vunpack.c.h.b16 %v336
    %v340 = vpack.c.b16 %v338, %v338
    %v341 = vpack.c.b16 %v339, %v339
    %344 = vst [vmem:[#allocation8] sm:$0xf] %v340
    %345 = vst [vmem:[#allocation8 + $0x4] sm:$0xf] %v341
    // Predicated region
    $region34: #{tpu_custom_call.1} parent=1 // pred_check
      _
    $region35: #{tpu_custom_call.1} parent=1 // pred_check_branch
      %347 = sbr.rel (0) target = $region37
    $region36: #{tpu_custom_call.1} parent=1 // pred_region
      %s349 = ssub.s32 128, 128
      %350 = vsyncadd [#allocation4], %s349
      %s351 = sshll.u32 [#allocation8], 4
      %s352 = int_to_ptr.vmem [resolvable:$true] %s351
      %357 = dma.vmem_to_hbm [thread:$0]  %s352, 128, %s5, [#allocation4], 64, 64, 4
    $region37: #{tpu_custom_call.1} parent=1 // pred_fallthru
      _
    // Predicated region
    $region38: #{tpu_custom_call.1} parent=1 // pred_check
      _
    $region39: #{tpu_custom_call.1} parent=1 // pred_check_branch
      %359 = sbr.rel (0) target = $region41
    $region40: #{tpu_custom_call.1} parent=1 // pred_region
      %360 = dma.done [#allocation4], 128
    $region41: #{tpu_custom_call.1} parent=1 // pred_fallthru
      _
    %361 = vsyncpa [#allocation3], 1
    %362 = vsyncpa [#allocation6], 1
    %363 = vsyncpa [#allocation4], 1

</llo_original>
